<compile_context>
chip_gen: v5e
topology: v5e:2x2
jax: 0.10.0
libtpu: 0.0.40
codegen_flags: <defaults>
</compile_context>

<pallas_src>
import functools

import jax
import jax.numpy as jnp
import numpy as np
from jax.experimental import pallas as pl
from jax.experimental.pallas import tpu as pltpu

DILATIONS = (3, 6, 9)


def _pick_nb_per_step(N):
    """Largest divisor of N that still leaves >= 2 grid steps (v7x: 2 TCs)."""
    if N <= 1:
        return 1
    for nb in range(N // 2, 0, -1):
        if N % nb == 0:
            return nb
    return 1


def _make_kernel(H, W, Cin, Cout4, dilations, pad, nb_img):
    HW = H * W

    def kernel(x_ref, w_ref, b_ref, g_ref, m_ref, o_ref):
        # x_ref : (nb_img, Cin, FLAT)  zero-padded, spatially-flattened input
        # w_ref : (ndil*Cout4, ndil*9*Cin) block-diagonal fused dilated-conv weights
        # b_ref : (ndil*Cout4, 1)
        # g_ref : (nb_img, Cout4, 1)   GAP branch (mean -> 1x1 conv -> ReLU) per image
        # m_ref : (ndil, 2, Cin, HW)   precomputed column masks [col>=d, col<W-d]
        # o_ref : (nb_img, (ndil+1)*Cout4, HW)
        w = w_ref[...]
        bias = b_ref[...]

        for b in range(nb_img):                       # static unroll over images/step
            x = x_ref[b]                              # (Cin, FLAT), loaded once
            taps = []
            for di, d in enumerate(dilations):
                m_lo = m_ref[di, 0]                   # (Cin, HW): col >= d
                m_hi = m_ref[di, 1]                   # (Cin, HW): col <  W - d
                for kh in range(3):
                    row_start = pad + (pad + (kh - 1) * d) * W
                    for kw in range(3):
                        s = (kw - 1) * d
                        win = x[:, row_start + s: row_start + s + HW]  # lane shift
                        if s > 0:
                            win = win * m_hi
                        elif s < 0:
                            win = win * m_lo
                        taps.append(win)
            tap_mat = jnp.concatenate(taps, axis=0)   # (ndil*9*Cin, HW), value only

            # All three dilated convs in one MXU matmul.
            dil = jnp.dot(w, tap_mat,
                          preferred_element_type=jnp.float32) + bias
            # GAP branch: bilinear upsample of a 1x1 map == constant broadcast.
            gap = jnp.broadcast_to(g_ref[b], (Cout4, HW))

            # Single, lane-dense, unmasked store of the full output block.
            o_ref[b] = jnp.concatenate([dil, gap], axis=0)

    return kernel


def fuse_multi_atrous_params(params, size, dilations=DILATIONS):
    """Init-time fusion: block-diagonal conv weights, GAP 1x1 weight, column masks."""
    *dil_params, (wg, bg) = params
    Cout4 = bg.shape[0]
    Cin = dil_params[0][0].shape[1]
    ndil = len(dilations)
    pad = max(dilations)
    assert pad >= max(dilations)          # window slices are in-bounds only then
    H = W = size
    HW = H * W

    w_fused = jnp.zeros((ndil * Cout4, ndil * 9 * Cin), jnp.float32)
    b_fused = jnp.zeros((ndil * Cout4, 1), jnp.float32)
    for i, (w, b) in enumerate(dil_params):
        # OIHW (Cout4, Cin, 3, 3) -> (Cout4, 9*Cin) with (kh, kw, ci) minor order
        blk = jnp.transpose(w, (0, 2, 3, 1)).reshape(Cout4, 9 * Cin)
        w_fused = w_fused.at[i * Cout4:(i + 1) * Cout4,
                             i * 9 * Cin:(i + 1) * 9 * Cin].set(blk)
        b_fused = b_fused.at[i * Cout4:(i + 1) * Cout4, 0].set(b)

    wg_mat = wg[:, :, 0, 0].astype(jnp.float32)       # (Cout4, Cin)
    bg_vec = bg.astype(jnp.float32)                   # (Cout4,)

    col = jnp.tile(jnp.arange(W, dtype=jnp.int32), H)             # (HW,)
    masks = jnp.stack(
        [jnp.stack([(col >= d).astype(jnp.float32),
                    (col < W - d).astype(jnp.float32)], axis=0)
         for d in dilations], axis=0)                              # (ndil, 2, HW)
    masks = jnp.broadcast_to(masks[:, :, None, :], (ndil, 2, Cin, HW))
    masks = masks + jnp.zeros_like(masks)              # materialize contiguous

    return (w_fused, b_fused, wg_mat, bg_vec, masks)


@jax.jit
def multi_atrous_forward(x, fused):
    """x: (N, Cin, H, W) float32. Returns (N, out_channel, H, W)."""
    dilations = DILATIONS
    w_fused, b_fused, wg_mat, bg, masks = fused
    N, Cin, H, W = x.shape
    Cout4 = wg_mat.shape[0]
    ndil = len(dilations)
    pad = max(dilations)
    HW = H * W
    FLAT = (H + 2 * pad) * W + 2 * pad
    Cout = (ndil + 1) * Cout4
    assert masks.shape == (ndil, 2, Cin, HW), "masks were fused for a different size"

    # ---- GAP branch hoisted out of the kernel (tiny matmul + ReLU) ----------
    gap = jnp.mean(x, axis=(2, 3))                                   # (N, Cin)
    g = jnp.maximum(gap @ wg_mat.T + bg[None, :], 0.0)[:, :, None]   # (N, Cout4, 1)
    g = g.astype(jnp.float32)

    # ---- input prep: zero-pad H, flatten (H,W) into lanes, pad flat axis ----
    xh = jnp.pad(x, ((0, 0), (0, 0), (pad, pad), (0, 0)))
    xf = jnp.pad(xh.reshape(N, Cin, (H + 2 * pad) * W),
                 ((0, 0), (0, 0), (pad, pad)))                       # (N, Cin, FLAT)

    nb_img = _pick_nb_per_step(N)
    grid = (N // nb_img,)
    kernel = _make_kernel(H, W, Cin, Cout4, dilations, pad, nb_img)

    out = pl.pallas_call(
        kernel,
        out_shape=jax.ShapeDtypeStruct((N, Cout, HW), jnp.float32),
        grid_spec=pltpu.PrefetchScalarGridSpec(
            num_scalar_prefetch=0,
            grid=grid,
            in_specs=[
                pl.BlockSpec((nb_img, Cin, FLAT), lambda n: (n, 0, 0)),
                pl.BlockSpec(w_fused.shape, lambda n: (0, 0)),
                pl.BlockSpec(b_fused.shape, lambda n: (0, 0)),
                pl.BlockSpec((nb_img, Cout4, 1), lambda n: (n, 0, 0)),
                pl.BlockSpec(masks.shape, lambda n: (0, 0, 0, 0)),
            ],
            out_specs=pl.BlockSpec((nb_img, Cout, HW), lambda n: (n, 0, 0)),
        ),
        compiler_params=pltpu.CompilerParams(
            dimension_semantics=("parallel",)),
    )(xf, w_fused, b_fused, g, masks)

    # (N, Cout, H*W) -> (N, Cout, H, W): contiguous reshape, no transpose.
    return out.reshape(N, Cout, H, W)


def _reference(x, params):
    """Plain-JAX reference matching the PyTorch forward."""
    (w3, b3), (w6, b6), (w9, b9), (wg, bg) = params
    dn = ("NCHW", "OIHW", "NCHW")
    outs = []
    for w, b, d in ((w3, b3, 3), (w6, b6, 6), (w9, b9, 9)):
        y = jax.lax.conv_general_dilated(x, w, (1, 1), [(d, d), (d, d)],
                                         rhs_dilation=(d, d),
                                         dimension_numbers=dn)
        outs.append(y + b[None, :, None, None])
    gap = jnp.mean(x, axis=(2, 3), keepdims=True)
    g = jax.lax.conv_general_dilated(gap, wg, (1, 1), "VALID",
                                     dimension_numbers=dn)
    g = jnp.maximum(g + bg[None, :, None, None], 0.0)
    g = jnp.broadcast_to(g, (x.shape[0], bg.shape[0], x.shape[2], x.shape[3]))
    outs.append(g)
    return jnp.concatenate(outs, axis=1)


def _init_params(key, in_channel, out_channel):
    cout4 = out_channel // 4
    ks = jax.random.split(key, 8)
    params = []
    for i, _ in enumerate(DILATIONS):
        w = 0.1 * jax.random.normal(ks[2 * i], (cout4, in_channel, 3, 3), jnp.float32)
        b = 0.1 * jax.random.normal(ks[2 * i + 1], (cout4,), jnp.float32)
        params.append((w, b))
    wg = 0.1 * jax.random.normal(ks[6], (cout4, in_channel, 1, 1), jnp.float32)
    bg = 0.1 * jax.random.normal(ks[7], (cout4,), jnp.float32)
    params.append((wg, bg))
    return params


if __name__ == "__main__":
    key = jax.random.PRNGKey(0)
    kx, kp = jax.random.split(key)

    N, C_in, size = 2, 4, 16      # MultiAtrous(in_channel=4, out_channel=16, size=16)
    out_channel = 16
    x = jax.random.normal(kx, (N, C_in, size, size), jnp.float32)
    params = _init_params(kp, C_in, out_channel)

    # Init-time fusion (hoisted out of the forward path).
    fused = fuse_multi_atrous_params(params, size)
    fused = jax.tree_util.tree_map(jax.block_until_ready, fused)

    out = multi_atrous_forward(x, fused)
    out = jax.block_until_ready(out)

    ref = _reference(x, params)
    np.testing.assert_allclose(np.asarray(out), np.asarray(ref), rtol=1e-4, atol=1e-4)
    assert out.shape == (N, out_channel, size, size)
    print("KERNEL_OK")
</pallas_src>

<mosaic_0001>
module attributes {stable_mosaic.version = 11 : i64} {
  func.func @kernel(%arg0: i32, %arg1: memref<1x4x562xf32, #tpu.memory_space<vmem>>, %arg2: memref<12x108xf32, #tpu.memory_space<vmem>>, %arg3: memref<12x1xf32, #tpu.memory_space<vmem>>, %arg4: memref<1x4x1xf32, #tpu.memory_space<vmem>>, %arg5: memref<3x2x4x256xf32, #tpu.memory_space<vmem>>, %arg6: memref<1x16x256xf32, #tpu.memory_space<vmem>>) attributes {dimension_semantics = [#tpu.dimension_semantics<parallel>], iteration_bounds = array<i64: 2>, scalar_prefetch = 0 : i64, scratch_operands = 0 : i64, tpu.core_type = #tpu.core_type<tc>, window_params = [{transform_indices = @transform_0, window_bounds = array<i64: 1, 4, 562>}, {pipeline_mode = #tpu.pipeline_mode<synchronous>, transform_indices = @transform_1, window_bounds = array<i64: 12, 108>}, {pipeline_mode = #tpu.pipeline_mode<synchronous>, transform_indices = @transform_2, window_bounds = array<i64: 12, 1>}, {transform_indices = @transform_3, window_bounds = array<i64: 1, 4, 1>}, {pipeline_mode = #tpu.pipeline_mode<synchronous>, transform_indices = @transform_4, window_bounds = array<i64: 3, 2, 4, 256>}, {transform_indices = @transform_5, window_bounds = array<i64: 1, 16, 256>}]} {
    %c0 = arith.constant 0 : index
    %c0_0 = arith.constant 0 : index
    %0 = vector.load %arg2[%c0, %c0_0] : memref<12x108xf32, #tpu.memory_space<vmem>>, vector<12x108xf32>
    %c0_1 = arith.constant 0 : index
    %c0_2 = arith.constant 0 : index
    %1 = vector.load %arg3[%c0_1, %c0_2] : memref<12x1xf32, #tpu.memory_space<vmem>>, vector<12x1xf32>
    %c0_3 = arith.constant 0 : index
    %c0_4 = arith.constant 0 : index
    %c0_5 = arith.constant 0 : index
    %2 = vector.load %arg1[%c0_3, %c0_4, %c0_5] : memref<1x4x562xf32, #tpu.memory_space<vmem>>, vector<1x4x562xf32>
    %3 = vector.shape_cast %2 : vector<1x4x562xf32> to vector<4x562xf32>
    %c0_6 = arith.constant 0 : index
    %c0_7 = arith.constant 0 : index
    %c0_8 = arith.constant 0 : index
    %c0_9 = arith.constant 0 : index
    %4 = vector.load %arg5[%c0_6, %c0_7, %c0_8, %c0_9] : memref<3x2x4x256xf32, #tpu.memory_space<vmem>>, vector<1x1x4x256xf32>
    %5 = vector.shape_cast %4 : vector<1x1x4x256xf32> to vector<4x256xf32>
    %c0_10 = arith.constant 0 : index
    %c1 = arith.constant 1 : index
    %c0_11 = arith.constant 0 : index
    %c0_12 = arith.constant 0 : index
    %6 = vector.load %arg5[%c0_10, %c1, %c0_11, %c0_12] : memref<3x2x4x256xf32, #tpu.memory_space<vmem>>, vector<1x1x4x256xf32>
    %7 = vector.shape_cast %6 : vector<1x1x4x256xf32> to vector<4x256xf32>
    %8 = vector.extract_strided_slice %3 {offsets = [0, 102], sizes = [4, 256], strides = [1, 1]} : vector<4x562xf32> to vector<4x256xf32>
    %9 = arith.mulf %8, %5 : vector<4x256xf32>
    %10 = vector.extract_strided_slice %3 {offsets = [0, 105], sizes = [4, 256], strides = [1, 1]} : vector<4x562xf32> to vector<4x256xf32>
    %11 = vector.extract_strided_slice %3 {offsets = [0, 108], sizes = [4, 256], strides = [1, 1]} : vector<4x562xf32> to vector<4x256xf32>
    %12 = arith.mulf %11, %7 : vector<4x256xf32>
    %13 = vector.extract_strided_slice %3 {offsets = [0, 150], sizes = [4, 256], strides = [1, 1]} : vector<4x562xf32> to vector<4x256xf32>
    %14 = arith.mulf %13, %5 : vector<4x256xf32>
    %15 = vector.extract_strided_slice %3 {offsets = [0, 153], sizes = [4, 256], strides = [1, 1]} : vector<4x562xf32> to vector<4x256xf32>
    %16 = vector.extract_strided_slice %3 {offsets = [0, 156], sizes = [4, 256], strides = [1, 1]} : vector<4x562xf32> to vector<4x256xf32>
    %17 = arith.mulf %16, %7 : vector<4x256xf32>
    %18 = vector.extract_strided_slice %3 {offsets = [0, 198], sizes = [4, 256], strides = [1, 1]} : vector<4x562xf32> to vector<4x256xf32>
    %19 = arith.mulf %18, %5 : vector<4x256xf32>
    %20 = vector.extract_strided_slice %3 {offsets = [0, 201], sizes = [4, 256], strides = [1, 1]} : vector<4x562xf32> to vector<4x256xf32>
    %21 = vector.extract_strided_slice %3 {offsets = [0, 204], sizes = [4, 256], strides = [1, 1]} : vector<4x562xf32> to vector<4x256xf32>
    %22 = arith.mulf %21, %7 : vector<4x256xf32>
    %c1_13 = arith.constant 1 : index
    %c0_14 = arith.constant 0 : index
    %c0_15 = arith.constant 0 : index
    %c0_16 = arith.constant 0 : index
    %23 = vector.load %arg5[%c1_13, %c0_14, %c0_15, %c0_16] : memref<3x2x4x256xf32, #tpu.memory_space<vmem>>, vector<1x1x4x256xf32>
    %24 = vector.shape_cast %23 : vector<1x1x4x256xf32> to vector<4x256xf32>
    %c1_17 = arith.constant 1 : index
    %c1_18 = arith.constant 1 : index
    %c0_19 = arith.constant 0 : index
    %c0_20 = arith.constant 0 : index
    %25 = vector.load %arg5[%c1_17, %c1_18, %c0_19, %c0_20] : memref<3x2x4x256xf32, #tpu.memory_space<vmem>>, vector<1x1x4x256xf32>
    %26 = vector.shape_cast %25 : vector<1x1x4x256xf32> to vector<4x256xf32>
    %27 = vector.extract_strided_slice %3 {offsets = [0, 51], sizes = [4, 256], strides = [1, 1]} : vector<4x562xf32> to vector<4x256xf32>
    %28 = arith.mulf %27, %24 : vector<4x256xf32>
    %29 = vector.extract_strided_slice %3 {offsets = [0, 57], sizes = [4, 256], strides = [1, 1]} : vector<4x562xf32> to vector<4x256xf32>
    %30 = vector.extract_strided_slice %3 {offsets = [0, 63], sizes = [4, 256], strides = [1, 1]} : vector<4x562xf32> to vector<4x256xf32>
    %31 = arith.mulf %30, %26 : vector<4x256xf32>
    %32 = vector.extract_strided_slice %3 {offsets = [0, 147], sizes = [4, 256], strides = [1, 1]} : vector<4x562xf32> to vector<4x256xf32>
    %33 = arith.mulf %32, %24 : vector<4x256xf32>
    %34 = vector.extract_strided_slice %3 {offsets = [0, 153], sizes = [4, 256], strides = [1, 1]} : vector<4x562xf32> to vector<4x256xf32>
    %35 = vector.extract_strided_slice %3 {offsets = [0, 159], sizes = [4, 256], strides = [1, 1]} : vector<4x562xf32> to vector<4x256xf32>
    %36 = arith.mulf %35, %26 : vector<4x256xf32>
    %37 = vector.extract_strided_slice %3 {offsets = [0, 243], sizes = [4, 256], strides = [1, 1]} : vector<4x562xf32> to vector<4x256xf32>
    %38 = arith.mulf %37, %24 : vector<4x256xf32>
    %39 = vector.extract_strided_slice %3 {offsets = [0, 249], sizes = [4, 256], strides = [1, 1]} : vector<4x562xf32> to vector<4x256xf32>
    %40 = vector.extract_strided_slice %3 {offsets = [0, 255], sizes = [4, 256], strides = [1, 1]} : vector<4x562xf32> to vector<4x256xf32>
    %41 = arith.mulf %40, %26 : vector<4x256xf32>
    %c2 = arith.constant 2 : index
    %c0_21 = arith.constant 0 : index
    %c0_22 = arith.constant 0 : index
    %c0_23 = arith.constant 0 : index
    %42 = vector.load %arg5[%c2, %c0_21, %c0_22, %c0_23] : memref<3x2x4x256xf32, #tpu.memory_space<vmem>>, vector<1x1x4x256xf32>
    %43 = vector.shape_cast %42 : vector<1x1x4x256xf32> to vector<4x256xf32>
    %c2_24 = arith.constant 2 : index
    %c1_25 = arith.constant 1 : index
    %c0_26 = arith.constant 0 : index
    %c0_27 = arith.constant 0 : index
    %44 = vector.load %arg5[%c2_24, %c1_25, %c0_26, %c0_27] : memref<3x2x4x256xf32, #tpu.memory_space<vmem>>, vector<1x1x4x256xf32>
    %45 = vector.shape_cast %44 : vector<1x1x4x256xf32> to vector<4x256xf32>
    %46 = vector.extract_strided_slice %3 {offsets = [0, 0], sizes = [4, 256], strides = [1, 1]} : vector<4x562xf32> to vector<4x256xf32>
    %47 = arith.mulf %46, %43 : vector<4x256xf32>
    %48 = vector.extract_strided_slice %3 {offsets = [0, 9], sizes = [4, 256], strides = [1, 1]} : vector<4x562xf32> to vector<4x256xf32>
    %49 = vector.extract_strided_slice %3 {offsets = [0, 18], sizes = [4, 256], strides = [1, 1]} : vector<4x562xf32> to vector<4x256xf32>
    %50 = arith.mulf %49, %45 : vector<4x256xf32>
    %51 = vector.extract_strided_slice %3 {offsets = [0, 144], sizes = [4, 256], strides = [1, 1]} : vector<4x562xf32> to vector<4x256xf32>
    %52 = arith.mulf %51, %43 : vector<4x256xf32>
    %53 = vector.extract_strided_slice %3 {offsets = [0, 153], sizes = [4, 256], strides = [1, 1]} : vector<4x562xf32> to vector<4x256xf32>
    %54 = vector.extract_strided_slice %3 {offsets = [0, 162], sizes = [4, 256], strides = [1, 1]} : vector<4x562xf32> to vector<4x256xf32>
    %55 = arith.mulf %54, %45 : vector<4x256xf32>
    %56 = vector.extract_strided_slice %3 {offsets = [0, 288], sizes = [4, 256], strides = [1, 1]} : vector<4x562xf32> to vector<4x256xf32>
    %57 = arith.mulf %56, %43 : vector<4x256xf32>
    %58 = vector.extract_strided_slice %3 {offsets = [0, 297], sizes = [4, 256], strides = [1, 1]} : vector<4x562xf32> to vector<4x256xf32>
    %59 = vector.extract_strided_slice %3 {offsets = [0, 306], sizes = [4, 256], strides = [1, 1]} : vector<4x562xf32> to vector<4x256xf32>
    %60 = arith.mulf %59, %45 : vector<4x256xf32>
    %61 = tpu.concatenate %9, %10, %12, %14, %15, %17, %19, %20, %22, %28, %29, %31, %33, %34, %36, %38 in 0 : vector<4x256xf32>, vector<4x256xf32>, vector<4x256xf32>, vector<4x256xf32>, vector<4x256xf32>, vector<4x256xf32>, vector<4x256xf32>, vector<4x256xf32>, vector<4x256xf32>, vector<4x256xf32>, vector<4x256xf32>, vector<4x256xf32>, vector<4x256xf32>, vector<4x256xf32>, vector<4x256xf32>, vector<4x256xf32> -> vector<64x256xf32>
    %62 = tpu.concatenate %39, %41, %47, %48, %50, %52, %53, %55, %57, %58, %60 in 0 : vector<4x256xf32>, vector<4x256xf32>, vector<4x256xf32>, vector<4x256xf32>, vector<4x256xf32>, vector<4x256xf32>, vector<4x256xf32>, vector<4x256xf32>, vector<4x256xf32>, vector<4x256xf32>, vector<4x256xf32> -> vector<44x256xf32>
    %63 = tpu.concatenate %61, %62 in 0 : vector<64x256xf32>, vector<44x256xf32> -> vector<108x256xf32>
    %cst = arith.constant dense<0.000000e+00> : vector<12x256xf32>
    %64 = tpu.matmul %0, %63, %cst {dimension_numbers = #tpu.dot_dimension_numbers<[1], [0], [0], [1], [0, 0, 1, 1], [], []>} : vector<12x108xf32>, vector<108x256xf32>, vector<12x256xf32> -> vector<12x256xf32>
    %65 = vector.broadcast %1 : vector<12x1xf32> to vector<12x256xf32>
    %66 = arith.addf %64, %65 : vector<12x256xf32>
    %c0_28 = arith.constant 0 : index
    %c0_29 = arith.constant 0 : index
    %c0_30 = arith.constant 0 : index
    %67 = vector.load %arg4[%c0_28, %c0_29, %c0_30] : memref<1x4x1xf32, #tpu.memory_space<vmem>>, vector<1x4x1xf32>
    %68 = vector.shape_cast %67 : vector<1x4x1xf32> to vector<4x1xf32>
    %69 = vector.shape_cast %68 : vector<4x1xf32> to vector<4x1xf32>
    %70 = vector.broadcast %69 : vector<4x1xf32> to vector<4x256xf32>
    %71 = tpu.concatenate %66, %70 in 0 : vector<12x256xf32>, vector<4x256xf32> -> vector<16x256xf32>
    %c0_31 = arith.constant 0 : index
    %c0_32 = arith.constant 0 : index
    %c0_33 = arith.constant 0 : index
    %72 = vector.load %arg6[%c0_31, %c0_32, %c0_33] : memref<1x16x256xf32, #tpu.memory_space<vmem>>, vector<1x16x256xf32>
    %73 = vector.shape_cast %72 : vector<1x16x256xf32> to vector<16x256xf32>
    %74 = vector.shape_cast %71 : vector<16x256xf32> to vector<1x16x256xf32>
    tpu.vector_store %arg6[%c0_31, %c0_32, %c0_33], %74 {strides = array<i32>} : memref<1x16x256xf32, #tpu.memory_space<vmem>>, vector<1x16x256xf32>,
    return
  }
  func.func @transform_0(%arg0: i32) -> (i32, i32, i32) {
    %c0_i32 = arith.constant 0 : i32
    %c0_i32_0 = arith.constant 0 : i32
    %c0_i32_1 = arith.constant 0 : i32
    return %arg0, %c0_i32, %c0_i32_0 : i32, i32, i32
  }
  func.func @transform_1(%arg0: i32) -> (i32, i32) {
    %c0_i32 = arith.constant 0 : i32
    %c0_i32_0 = arith.constant 0 : i32
    %c0_i32_1 = arith.constant 0 : i32
    return %c0_i32, %c0_i32_0 : i32, i32
  }
  func.func @transform_2(%arg0: i32) -> (i32, i32) {
    %c0_i32 = arith.constant 0 : i32
    %c0_i32_0 = arith.constant 0 : i32
    %c0_i32_1 = arith.constant 0 : i32
    return %c0_i32, %c0_i32_0 : i32, i32
  }
  func.func @transform_3(%arg0: i32) -> (i32, i32, i32) {
    %c0_i32 = arith.constant 0 : i32
    %c0_i32_0 = arith.constant 0 : i32
    %c0_i32_1 = arith.constant 0 : i32
    return %arg0, %c0_i32, %c0_i32_0 : i32, i32, i32
  }
  func.func @transform_4(%arg0: i32) -> (i32, i32, i32, i32) {
    %c0_i32 = arith.constant 0 : i32
    %c0_i32_0 = arith.constant 0 : i32
    %c0_i32_1 = arith.constant 0 : i32
    %c0_i32_2 = arith.constant 0 : i32
    %c0_i32_3 = arith.constant 0 : i32
    return %c0_i32, %c0_i32_0, %c0_i32_1, %c0_i32_2 : i32, i32, i32, i32
  }
  func.func @transform_5(%arg0: i32) -> (i32, i32, i32) {
    %c0_i32 = arith.constant 0 : i32
    %c0_i32_0 = arith.constant 0 : i32
    %c0_i32_1 = arith.constant 0 : i32
    return %arg0, %c0_i32, %c0_i32_0 : i32, i32, i32
  }
}

</mosaic_0001>

<llo_original>
// kernel: multi_atrous_forward.1
$region0: #{multi_atrous_forward.1}
  #allocation0 [shape = 'u32[]', space=smem, size = 0x4, offset = 0x4, fixed_abs, tag = 'smem constant byte address 0x4 - core index']
  #allocation1 [shape = 'u32[72,128]{1,0:T(1,128)}', space=vmem, size = 0x9000, scoped, tag = 'internal scratch']
  %s0 = inlined_call_operand.vmem [shape: f32[2,4,562], index: 0, kind: input, shape index: {}]
  %s1 = inlined_call_operand.vmem [shape: f32[12,108], index: 1, kind: input, shape index: {}]
  %s2 = inlined_call_operand.vmem [shape: f32[12,1], index: 2, kind: input, shape index: {}]
  %s3 = inlined_call_operand.vmem [shape: f32[2,4,1], index: 3, kind: input, shape index: {}]
  %s4 = inlined_call_operand.vmem [shape: f32[3,2,4,256], index: 4, kind: input, shape index: {}]
  %s5 = inlined_call_operand.vmem [shape: f32[2,16,256], index: 5, kind: output, shape index: {}]
  %s6 = sld [smem:[#allocation0]]
  $region53: #{multi_atrous_forward.1} parent=0
    _
  %s8 = ssub.s32 1, %s6
  %s9 = scalar_select 0, %s8, %s6
  loop: start=0, step=1, limit=4
  $region2: #{multi_atrous_forward.1} parent=0 // loop_pre_header
    _
  $region3: #{multi_atrous_forward.1} parent=0 // loop_header
    %s11 = sphi 0, %s15
    %p12 = scmp.ge.s32.totalorder %s11, 4
    %s21 = sphi 0, %s23
    %s24 = sphi 0, %s21
    %s25 = sphi 0, %s24
    %s41 = sphi 0, %s25
    %s45 = sphi 0, %s45
    %s47 = sphi 0, %s45
    %s48 = sphi 0, %s47
    %s62 = sphi 0, %s48
    %s66 = sphi 0, %s66
    %s68 = sphi 0, %s66
    %s69 = sphi 0, %s68
    %s83 = sphi 0, %s69
    %s89 = sphi 0, %s91
    %s92 = sphi 0, %s89
    %s93 = sphi 0, %s92
    %s109 = sphi 0, %s93
    %s113 = sphi 0, %s113
    %s115 = sphi 0, %s113
    %s116 = sphi 0, %s115
    %s130 = sphi 0, %s116
    %s136 = sphi 0, %s138
    %s139 = sphi 0, %s136
    %s140 = sphi 0, %s139
    %s156 = sphi 0, %s140
  $region4: #{multi_atrous_forward.1} parent=0 // loop_header_branch
    %14 = sbr.rel (%p12) target = $region8
  $region5: #{multi_atrous_forward.1} parent=0 // loop_body
    %s16 = ssub.s32 %s11, 1
    %s17 = ssub.s32 %s11, 2
    %s18 = sadd.s32 %s11, 1
    %s19 = ssub.s32 %s11, %s18
    %p20 = scmp.eq.s32.totalorder %s19, 0
    %s22 = sadd.s32 %s21, 1
    %s23 = scalar_select %p20, %s21, %s22
    %p26 = pneg %p20
    %p27 = scmp.eq.s32.totalorder %s11, 1
    %p28 = por %p26, %p27
    %p29 = scmp.ne.s32.totalorder %s21, %s24
    %p30 = scmp.eq.s32.totalorder %s11, 0
    %p31 = por %p29, %p30
    %p32 = scmp.ne.s32.totalorder %s21, %s24
    %p33 = scmp.eq.s32.totalorder %s16, 1
    %p34 = por %p32, %p33
    %p35 = scmp.ne.s32.totalorder %s24, %s25
    %p36 = scmp.eq.s32.totalorder %s16, 0
    %p37 = por %p35, %p36
    %p38 = scmp.ne.s32.totalorder %s24, %s25
    %p39 = scmp.eq.s32.totalorder %s17, 1
    %p40 = por %p38, %p39
    %p42 = scmp.ne.s32.totalorder %s25, %s41
    %p43 = scmp.eq.s32.totalorder %s17, 0
    %p44 = por %p42, %p43
    %s46 = sadd.s32 %s45, 1
    %p49 = scmp.eq.s32.totalorder %s11, 1
    %p50 = scmp.ne.s32.totalorder %s45, %s47
    %p51 = scmp.eq.s32.totalorder %s11, 0
    %p52 = por %p50, %p51
    %p53 = scmp.ne.s32.totalorder %s45, %s47
    %p54 = scmp.eq.s32.totalorder %s16, 1
    %p55 = por %p53, %p54
    %p56 = scmp.ne.s32.totalorder %s47, %s48
    %p57 = scmp.eq.s32.totalorder %s16, 0
    %p58 = por %p56, %p57
    %p59 = scmp.ne.s32.totalorder %s47, %s48
    %p60 = scmp.eq.s32.totalorder %s17, 1
    %p61 = por %p59, %p60
    %p63 = scmp.ne.s32.totalorder %s48, %s62
    %p64 = scmp.eq.s32.totalorder %s17, 0
    %p65 = por %p63, %p64
    %s67 = sadd.s32 %s66, 1
    %p70 = scmp.eq.s32.totalorder %s11, 1
    %p71 = scmp.ne.s32.totalorder %s66, %s68
    %p72 = scmp.eq.s32.totalorder %s11, 0
    %p73 = por %p71, %p72
    %p74 = scmp.ne.s32.totalorder %s66, %s68
    %p75 = scmp.eq.s32.totalorder %s16, 1
    %p76 = por %p74, %p75
    %p77 = scmp.ne.s32.totalorder %s68, %s69
    %p78 = scmp.eq.s32.totalorder %s16, 0
    %p79 = por %p77, %p78
    %p80 = scmp.ne.s32.totalorder %s68, %s69
    %p81 = scmp.eq.s32.totalorder %s17, 1
    %p82 = por %p80, %p81
    %p84 = scmp.ne.s32.totalorder %s69, %s83
    %p85 = scmp.eq.s32.totalorder %s17, 0
    %p86 = por %p84, %p85
    %s87 = ssub.s32 %s11, %s18
    %p88 = scmp.eq.s32.totalorder %s87, 0
    %s90 = sadd.s32 %s89, 1
    %s91 = scalar_select %p88, %s89, %s90
    %p94 = pneg %p88
    %p95 = scmp.eq.s32.totalorder %s11, 1
    %p96 = por %p94, %p95
    %p97 = scmp.ne.s32.totalorder %s89, %s92
    %p98 = scmp.eq.s32.totalorder %s11, 0
    %p99 = por %p97, %p98
    %p100 = scmp.ne.s32.totalorder %s89, %s92
    %p101 = scmp.eq.s32.totalorder %s16, 1
    %p102 = por %p100, %p101
    %p103 = scmp.ne.s32.totalorder %s92, %s93
    %p104 = scmp.eq.s32.totalorder %s16, 0
    %p105 = por %p103, %p104
    %p106 = scmp.ne.s32.totalorder %s92, %s93
    %p107 = scmp.eq.s32.totalorder %s17, 1
    %p108 = por %p106, %p107
    %p110 = scmp.ne.s32.totalorder %s93, %s109
    %p111 = scmp.eq.s32.totalorder %s17, 0
    %p112 = por %p110, %p111
    %s114 = sadd.s32 %s113, 1
    %p117 = scmp.eq.s32.totalorder %s11, 1
    %p118 = scmp.ne.s32.totalorder %s113, %s115
    %p119 = scmp.eq.s32.totalorder %s11, 0
    %p120 = por %p118, %p119
    %p121 = scmp.ne.s32.totalorder %s113, %s115
    %p122 = scmp.eq.s32.totalorder %s16, 1
    %p123 = por %p121, %p122
    %p124 = scmp.ne.s32.totalorder %s115, %s116
    %p125 = scmp.eq.s32.totalorder %s16, 0
    %p126 = por %p124, %p125
    %p127 = scmp.ne.s32.totalorder %s115, %s116
    %p128 = scmp.eq.s32.totalorder %s17, 1
    %p129 = por %p127, %p128
    %p131 = scmp.ne.s32.totalorder %s116, %s130
    %p132 = scmp.eq.s32.totalorder %s17, 0
    %p133 = por %p131, %p132
    %s134 = ssub.s32 %s11, %s18
    %p135 = scmp.eq.s32.totalorder %s134, 0
    %s137 = sadd.s32 %s136, 1
    %s138 = scalar_select %p135, %s136, %s137
    %p141 = pneg %p135
    %p142 = scmp.eq.s32.totalorder %s11, 1
    %p143 = por %p141, %p142
    %p144 = scmp.ne.s32.totalorder %s136, %s139
    %p145 = scmp.eq.s32.totalorder %s11, 0
    %p146 = por %p144, %p145
    %p147 = scmp.ne.s32.totalorder %s136, %s139
    %p148 = scmp.eq.s32.totalorder %s16, 1
    %p149 = por %p147, %p148
    %p150 = scmp.ne.s32.totalorder %s139, %s140
    %p151 = scmp.eq.s32.totalorder %s16, 0
    %p152 = por %p150, %p151
    %p153 = scmp.ne.s32.totalorder %s139, %s140
    %p154 = scmp.eq.s32.totalorder %s17, 1
    %p155 = por %p153, %p154
    %p157 = scmp.ne.s32.totalorder %s140, %s156
    %p158 = scmp.eq.s32.totalorder %s17, 0
    %p159 = por %p157, %p158
    %p160 = scmp.le.s32.totalorder 1, %s11
    %p161 = scmp.lt.s32.totalorder %s11, 3
    %p162 = pnand %p160, %p161
    %p163 = pneg %p162
    // Predicated region
    $region9: #{multi_atrous_forward.1} parent=5 // pred_check
      _
    $region10: #{multi_atrous_forward.1} parent=5 // pred_check_branch
      %165 = sbr.rel (%p162) target = $region12
    $region11: #{multi_atrous_forward.1} parent=5 // pred_region
      %s166 = ssub.s32 %s11, 1
      // Predicated region
      $region13: #{multi_atrous_forward.1} parent=11 // pred_check
        %p167 = pneg %p58
      $region14: #{multi_atrous_forward.1} parent=11 // pred_check_branch
        %169 = sbr.rel (%p167) target = $region16
      $region15: #{multi_atrous_forward.1} parent=11 // pred_region
        _
      $region16: #{multi_atrous_forward.1} parent=11 // pred_fallthru
        _
      // Predicated region
      $region17: #{multi_atrous_forward.1} parent=11 // pred_check
        %p170 = pneg %p79
      $region18: #{multi_atrous_forward.1} parent=11 // pred_check_branch
        %172 = sbr.rel (%p170) target = $region20
      $region19: #{multi_atrous_forward.1} parent=11 // pred_region
        _
      $region20: #{multi_atrous_forward.1} parent=11 // pred_fallthru
        _
      // Predicated region
      $region21: #{multi_atrous_forward.1} parent=11 // pred_check
        %p173 = pneg %p126
      $region22: #{multi_atrous_forward.1} parent=11 // pred_check_branch
        %175 = sbr.rel (%p173) target = $region24
      $region23: #{multi_atrous_forward.1} parent=11 // pred_region
        _
      $region24: #{multi_atrous_forward.1} parent=11 // pred_fallthru
        _
    $region12: #{multi_atrous_forward.1} parent=5 // pred_fallthru
      _
    %p176 = scmp.lt.s32.totalorder %s11, 2
    // Predicated region
    $region25: #{multi_atrous_forward.1} parent=5 // pred_check
      %p177 = pneg %p176
    $region26: #{multi_atrous_forward.1} parent=5 // pred_check_branch
      %179 = sbr.rel (%p177) target = $region28
    $region27: #{multi_atrous_forward.1} parent=5 // pred_region
      // Predicated region
      $region29: #{multi_atrous_forward.1} parent=27 // pred_check
        %p180 = pneg %p31
      $region30: #{multi_atrous_forward.1} parent=27 // pred_check_branch
        %182 = sbr.rel (%p180) target = $region32
      $region31: #{multi_atrous_forward.1} parent=27 // pred_region
        %p183 = scmp.lt.s32.totalorder %s11, 1
        %s184 = scalar_select %p183, %s11, 1
        %s185 = smul.addr %s184, 5
        %s186 = smul.addr %s185, 4
        %s187 = scalar_lea.vmem %s0, %s186
      $region32: #{multi_atrous_forward.1} parent=27 // pred_fallthru
        _
      // Predicated region
      $region33: #{multi_atrous_forward.1} parent=27 // pred_check
        %p188 = pneg %p99
      $region34: #{multi_atrous_forward.1} parent=27 // pred_check_branch
        %190 = sbr.rel (%p188) target = $region36
      $region35: #{multi_atrous_forward.1} parent=27 // pred_region
        %p191 = scmp.lt.s32.totalorder %s11, 1
        %s192 = scalar_select %p191, %s11, 1
        %s193 = smul.addr %s192, 4
        %s194 = scalar_lea.vmem %s3, %s193
      $region36: #{multi_atrous_forward.1} parent=27 // pred_fallthru
        _
    $region28: #{multi_atrous_forward.1} parent=5 // pred_fallthru
      _
    %p195 = scmp.le.s32.totalorder 1, %s11
    %p196 = scmp.lt.s32.totalorder %s11, 3
    %p197 = pnand %p195, %p196
    %p198 = pneg %p197
    // Predicated region
    $region37: #{multi_atrous_forward.1} parent=5 // pred_check
      _
    $region38: #{multi_atrous_forward.1} parent=5 // pred_check_branch
      %200 = sbr.rel (%p197) target = $region40
    $region39: #{multi_atrous_forward.1} parent=5 // pred_region
      %s201 = ssub.s32 %s11, 1
      %p202 = scmp.lt.s32.totalorder %s16, 1
      %s203 = scalar_select %p202, %s16, 1
      %s204 = smul.addr %s203, 5
      %s205 = smul.addr %s204, 4
      %s206 = scalar_lea.vmem %s0, %s205
      %p207 = pneg %p37
      %p208 = pneg %p34
      %p209 = pneg %p58
      %p210 = pneg %p55
      %p211 = pneg %p79
      %p212 = pneg %p76
      %p213 = scmp.lt.s32.totalorder %s16, 1
      %s214 = scalar_select %p213, %s16, 1
      %s215 = smul.addr %s214, 4
      %s216 = scalar_lea.vmem %s3, %s215
      %p217 = pneg %p105
      %p218 = pneg %p102
      %p219 = pneg %p126
      %p220 = pneg %p123
      %p221 = pneg %p152
      %p222 = pneg %p149
      %p223 = scmp.lt.s32.totalorder %s16, 1
      %s224 = scalar_select %p223, %s16, 1
      %s225 = smul.addr %s224, 4
      %s226 = smul.addr %s225, 8
      %s227 = scalar_lea.vmem %s5, %s226
      %p228 = scmp.lt.s32.totalorder %s16, 1
      %s229 = scalar_select %p228, %s16, 1
      %s230 = smul.addr %s229, 5
      %s231 = smul.addr %s230, 4
      %s232 = scalar_lea.vmem %s0, %s231
      %p233 = scmp.lt.s32.totalorder %s16, 1
      %s234 = scalar_select %p233, %s16, 1
      %s235 = smul.addr %s234, 4
      %s236 = scalar_lea.vmem %s3, %s235
      %p237 = scmp.lt.s32.totalorder %s16, 1
      %s238 = scalar_select %p237, %s16, 1
      %s239 = smul.addr %s238, 4
      %s240 = smul.addr %s239, 8
      %s241 = scalar_lea.vmem %s5, %s240
      %v242 = vld [vmem:[%s1] sm:$0xff]
      %v243 = vld [vmem:[%s1 + $0x8] sm:$0xf]
      %v244 = vld [vmem:[%s2] sm:$0xff]
      %v245 = vld [vmem:[%s2 + $0x8] sm:$0xf]
      %v246 = vld [vmem:[%s232] sm:$0xff]
      %v247 = vld [vmem:[%s232 + $0x8] sm:$0xff]
      %v248 = vld [vmem:[%s232 + $0x10] sm:$0xf]
      %v249 = vld [vmem:[%s4] sm:$0xff]
      %s250 = scalar_lea.vmem %s4, 8
      %v251 = vld [vmem:[%s250] sm:$0xff]
      %253 = vrot.lane.b32.xlu0 %v249, 102
      %v254 = vpop.permute.xlu0 %253
      %v255 = vrot.slane %v254, 4
      %vm256 = vcmask 834560
      %v257 = vsel %vm256, %v255, %v254
      %v260 = vmul.f32 %v246, %v257
      %v261 = vmul.f32 %v247, %v255
      %263 = vrot.lane.b32.xlu0 %v251, 108
      %v264 = vpop.permute.xlu0 %263
      %v265 = vrot.slane %v264, 4
      %vm266 = vcmask 883712
      %v267 = vsel %vm266, %v265, %v264
      %v270 = vmul.f32 %v246, %v267
      %v271 = vmul.f32 %v247, %v265
      %274 = vrot.lane.b32.xlu0 %v246, 106
      %v275 = vpop.permute.xlu0 %274
      %276 = vrot.lane.b32.xlu0 %v247, 106
      %v277 = vpop.permute.xlu0 %276
      %v278 = vrot.slane %v275, 4
      %v279 = vrot.slane %v277, 4
      %vm280 = vcmask 1043456
      %v281 = vsel %vm280, %v278, %v279
      %vm282 = vcmask 867328
      %v283 = vsel %vm282, %v281, %v277
      %v285 = vmul.f32 %v283, %v249
      %286 = vrot.lane.b32.xlu0 %v246, 100
      %v287 = vpop.permute.xlu0 %286
      %288 = vrot.lane.b32.xlu0 %v247, 100
      %v289 = vpop.permute.xlu0 %288
      %v290 = vrot.slane %v287, 4
      %v291 = vrot.slane %v289, 4
      %v292 = vsel %vm280, %v290, %v291
      %vm293 = vcmask 818176
      %v294 = vsel %vm293, %v292, %v289
      %v296 = vmul.f32 %v294, %v251
      %297 = vrot.lane.b32.xlu0 %v246, 58
      %v298 = vpop.permute.xlu0 %297
      %299 = vrot.lane.b32.xlu0 %v247, 58
      %v300 = vpop.permute.xlu0 %299
      %v301 = vrot.slane %v298, 4
      %v302 = vrot.slane %v300, 4
      %v303 = vsel %vm280, %v301, %v302
      %vm304 = vcmask 474112
      %v305 = vsel %vm304, %v303, %v300
      %v307 = vmul.f32 %v305, %v249
      %308 = vrot.lane.b32.xlu0 %v246, 52
      %v309 = vpop.permute.xlu0 %308
      %310 = vrot.lane.b32.xlu0 %v247, 52
      %v311 = vpop.permute.xlu0 %310
      %v312 = vrot.slane %v309, 4
      %v313 = vrot.slane %v311, 4
      %v314 = vsel %vm280, %v312, %v313
      %vm315 = vcmask 424960
      %v316 = vsel %vm315, %v314, %v311
      %v318 = vmul.f32 %v316, %v251
      %s319 = scalar_lea.vmem %s4, 16
      %v320 = vld [vmem:[%s319] sm:$0xff]
      %s321 = scalar_lea.vmem %s4, 24
      %v322 = vld [vmem:[%s321] sm:$0xff]
      %324 = vrot.lane.b32.xlu0 %v320, 51
      %v325 = vpop.permute.xlu0 %324
      %v326 = vrot.slane %v325, 4
      %vm327 = vcmask 416768
      %v328 = vsel %vm327, %v326, %v325
      %v331 = vmul.f32 %v246, %v328
      %v332 = vmul.f32 %v247, %v326
      %334 = vrot.lane.b32.xlu0 %v322, 63
      %v335 = vpop.permute.xlu0 %334
      %v336 = vrot.slane %v335, 4
      %vm337 = vcmask 515072
      %v338 = vsel %vm337, %v336, %v335
      %v341 = vmul.f32 %v246, %v338
      %v342 = vmul.f32 %v247, %v336
      %343 = vrot.lane.b32.xlu0 %v246, 109
      %v344 = vpop.permute.xlu0 %343
      %345 = vrot.lane.b32.xlu0 %v247, 109
      %v346 = vpop.permute.xlu0 %345
      %v347 = vrot.slane %v344, 4
      %v348 = vrot.slane %v346, 4
      %v349 = vsel %vm280, %v347, %v348
      %vm350 = vcmask 891904
      %v351 = vsel %vm350, %v349, %v346
      %v353 = vmul.f32 %v351, %v320
      %354 = vrot.lane.b32.xlu0 %v246, 97
      %v355 = vpop.permute.xlu0 %354
      %356 = vrot.lane.b32.xlu0 %v247, 97
      %v357 = vpop.permute.xlu0 %356
      %v358 = vrot.slane %v355, 4
      %v359 = vrot.slane %v357, 4
      %v360 = vsel %vm280, %v358, %v359
      %vm361 = vcmask 793600
      %v362 = vsel %vm361, %v360, %v357
      %v364 = vmul.f32 %v362, %v322
      %365 = vrot.lane.b32.xlu0 %v246, 13
      %v366 = vpop.permute.xlu0 %365
      %367 = vrot.lane.b32.xlu0 %v247, 13
      %v368 = vpop.permute.xlu0 %367
      %v369 = vrot.slane %v366, 4
      %v370 = vrot.slane %v368, 4
      %v371 = vsel %vm280, %v369, %v370
      %vm372 = vcmask 105472
      %v373 = vsel %vm372, %v371, %v368
      %v375 = vmul.f32 %v373, %v320
      %376 = vrot.lane.b32.xlu0 %v246, 1
      %v377 = vpop.permute.xlu0 %376
      %378 = vrot.lane.b32.xlu0 %v247, 1
      %v379 = vpop.permute.xlu0 %378
      %v380 = vrot.slane %v377, 4
      %v381 = vrot.slane %v379, 4
      %v382 = vsel %vm280, %v380, %v381
      %vm383 = vcmask 7168
      %v384 = vsel %vm383, %v382, %v379
      %v386 = vmul.f32 %v384, %v322
      %s387 = scalar_lea.vmem %s4, 32
      %v388 = vld [vmem:[%s387] sm:$0xff]
      %s389 = scalar_lea.vmem %s4, 40
      %v390 = vld [vmem:[%s389] sm:$0xff]
      %v391 = vmul.f32 %v246, %v388
      %393 = vrot.lane.b32.xlu0 %v390, 18
      %v394 = vpop.permute.xlu0 %393
      %v395 = vrot.slane %v394, 4
      %vm396 = vcmask 146432
      %v397 = vsel %vm396, %v395, %v394
      %v400 = vmul.f32 %v246, %v397
      %v401 = vmul.f32 %v247, %v395
      %402 = vrot.lane.b32.xlu0 %v246, 112
      %v403 = vpop.permute.xlu0 %402
      %404 = vrot.lane.b32.xlu0 %v247, 112
      %v405 = vpop.permute.xlu0 %404
      %v406 = vrot.slane %v403, 4
      %v407 = vrot.slane %v405, 4
      %v408 = vsel %vm280, %v406, %v407
      %vm409 = vcmask 916480
      %v410 = vsel %vm409, %v408, %v405
      %v412 = vmul.f32 %v410, %v388
      %413 = vrot.lane.b32.xlu0 %v246, 94
      %v414 = vpop.permute.xlu0 %413
      %415 = vrot.lane.b32.xlu0 %v247, 94
      %v416 = vpop.permute.xlu0 %415
      %v417 = vrot.slane %v414, 4
      %v418 = vrot.slane %v416, 4
      %v419 = vsel %vm280, %v417, %v418
      %vm420 = vcmask 769024
      %v421 = vsel %vm420, %v419, %v416
      %v423 = vmul.f32 %v421, %v390
      %425 = vrot.lane.b32.xlu0 %v388, 32
      %v426 = vpop.permute.xlu0 %425
      %v427 = vrot.slane %v426, 4
      %vm428 = vcmask 261120
      %v429 = vsel %vm428, %v427, %v426
      %v432 = vmul.f32 %v247, %v429
      %v433 = vmul.f32 %v248, %v427
      %434 = vrot.lane.b32.xlu0 %v390, 50
      %v435 = vpop.permute.xlu0 %434
      %v436 = vrot.slane %v435, 4
      %vm437 = vcmask 408576
      %v438 = vsel %vm437, %v436, %v435
      %v441 = vmul.f32 %v247, %v438
      %v442 = vmul.f32 %v248, %v436
      %445 = vst [vmem:[#allocation1] ss:$2 sm:$0xff] %v260
      %s446 = scalar_lea.vmem [#allocation1], 16
      %447 = vst [vmem:[%s446] ss:$2 sm:$0xff] %v261
      %v448 = vld.sshfl [vmem:[#allocation1] sm:$0xff pattern:$0x75316420]
      %v449 = vld.sshfl [vmem:[#allocation1 + $0x8] sm:$0xff pattern:$0x75316420]
      %v450 = vld.sshfl [vmem:[#allocation1 + $0x10] sm:$0xff pattern:$0x75316420]
      %s454 = scalar_lea.vmem [#allocation1], 1
      %455 = vst [vmem:[%s454] ss:$2 sm:$0xff] %v246
      %s456 = scalar_lea.vmem [#allocation1], 17
      %457 = vst [vmem:[%s456] ss:$2 sm:$0xff] %v247
      %v458 = vld.sshfl [vmem:[#allocation1] sm:$0xff pattern:$0x75316420]
      %v459 = vld.sshfl [vmem:[#allocation1 + $0x8] sm:$0xff pattern:$0x75316420]
      %v460 = vld.sshfl [vmem:[#allocation1 + $0x10] sm:$0xff pattern:$0x75316420]
      %461 = vrot.lane.b32.xlu0 %v458, 125
      %v462 = vpop.permute.xlu0 %461
      %463 = vrot.lane.b32.xlu0 %v459, 125
      %v464 = vpop.permute.xlu0 %463
      %465 = vrot.lane.b32.xlu0 %v460, 125
      %v466 = vpop.permute.xlu0 %465
      %vm467 = vcmask 1022976
      %v468 = vsel %vm467, %v462, %v464
      %v469 = vsel %vm467, %v464, %v466
      %475 = vst [vmem:[#allocation1] ss:$2 sm:$0xff] %v270
      %s476 = scalar_lea.vmem [#allocation1], 16
      %477 = vst [vmem:[%s476] ss:$2 sm:$0xff] %v271
      %v478 = vld.sshfl [vmem:[#allocation1] sm:$0xff pattern:$0x75316420]
      %v479 = vld.sshfl [vmem:[#allocation1 + $0x8] sm:$0xff pattern:$0x75316420]
      %v480 = vld.sshfl [vmem:[#allocation1 + $0x10] sm:$0xff pattern:$0x75316420]
      %481 = vrot.lane.b32.xlu0 %v478, 122
      %v482 = vpop.permute.xlu0 %481
      %483 = vrot.lane.b32.xlu0 %v479, 122
      %v484 = vpop.permute.xlu0 %483
      %485 = vrot.lane.b32.xlu0 %v480, 122
      %v486 = vpop.permute.xlu0 %485
      %vm487 = vcmask 998400
      %v488 = vsel %vm487, %v482, %v484
      %v489 = vsel %vm487, %v484, %v486
      %s494 = scalar_lea.vmem [#allocation1], 1
      %495 = vst [vmem:[%s494] ss:$2 sm:$0xff] %v285
      %v496 = vld.sshfl [vmem:[#allocation1] sm:$0xff pattern:$0x75316420]
      %v497 = vld.sshfl [vmem:[#allocation1 + $0x8] sm:$0xff pattern:$0x75316420]
      %498 = vrot.lane.b32.xlu0 %v496, 102
      %v499 = vpop.permute.xlu0 %498
      %500 = vrot.lane.b32.xlu0 %v497, 102
      %v501 = vpop.permute.xlu0 %500
      %v502 = vsel %vm256, %v499, %v501
      %506 = vst [vmem:[#allocation1] ss:$2 sm:$0xff] %v246
      %s507 = scalar_lea.vmem [#allocation1], 16
      %508 = vst [vmem:[%s507] ss:$2 sm:$0xff] %v247
      %v509 = vld.sshfl [vmem:[#allocation1 + $0x8] sm:$0xff pattern:$0x75316420]
      %v510 = vld.sshfl [vmem:[#allocation1 + $0x10] sm:$0xff pattern:$0x75316420]
      %v511 = vld.sshfl [vmem:[#allocation1 + $0x18] sm:$0xff pattern:$0x75316420]
      %512 = vrot.lane.b32.xlu0 %v509, 77
      %v513 = vpop.permute.xlu0 %512
      %514 = vrot.lane.b32.xlu0 %v510, 77
      %v515 = vpop.permute.xlu0 %514
      %516 = vrot.lane.b32.xlu0 %v511, 77
      %v517 = vpop.permute.xlu0 %516
      %vm518 = vcmask 629760
      %v519 = vsel %vm518, %v513, %v515
      %v520 = vsel %vm518, %v515, %v517
      %s525 = scalar_lea.vmem [#allocation1], 1
      %526 = vst [vmem:[%s525] ss:$2 sm:$0xff] %v296
      %v527 = vld.sshfl [vmem:[#allocation1] sm:$0xff pattern:$0x75316420]
      %v528 = vld.sshfl [vmem:[#allocation1 + $0x8] sm:$0xff pattern:$0x75316420]
      %529 = vrot.lane.b32.xlu0 %v527, 102
      %v530 = vpop.permute.xlu0 %529
      %531 = vrot.lane.b32.xlu0 %v528, 102
      %v532 = vpop.permute.xlu0 %531
      %v533 = vsel %vm256, %v530, %v532
      %538 = vst [vmem:[#allocation1] ss:$2 sm:$0xff] %v307
      %v539 = vld.sshfl [vmem:[#allocation1] sm:$0xff pattern:$0x75316420]
      %v540 = vld.sshfl [vmem:[#allocation1 + $0x8] sm:$0xff pattern:$0x75316420]
      %541 = vrot.lane.b32.xlu0 %v539, 102
      %v542 = vpop.permute.xlu0 %541
      %543 = vrot.lane.b32.xlu0 %v540, 102
      %v544 = vpop.permute.xlu0 %543
      %v545 = vsel %vm256, %v542, %v544
      %s549 = scalar_lea.vmem [#allocation1], 1
      %550 = vst [vmem:[%s549] ss:$2 sm:$0xff] %v246
      %s551 = scalar_lea.vmem [#allocation1], 17
      %552 = vst [vmem:[%s551] ss:$2 sm:$0xff] %v247
      %v553 = vld.sshfl [vmem:[#allocation1 + $0x8] sm:$0xff pattern:$0x75316420]
      %v554 = vld.sshfl [vmem:[#allocation1 + $0x10] sm:$0xff pattern:$0x75316420]
      %v555 = vld.sshfl [vmem:[#allocation1 + $0x18] sm:$0xff pattern:$0x75316420]
      %556 = vrot.lane.b32.xlu0 %v553, 29
      %v557 = vpop.permute.xlu0 %556
      %558 = vrot.lane.b32.xlu0 %v554, 29
      %v559 = vpop.permute.xlu0 %558
      %560 = vrot.lane.b32.xlu0 %v555, 29
      %v561 = vpop.permute.xlu0 %560
      %vm562 = vcmask 236544
      %v563 = vsel %vm562, %v557, %v559
      %v564 = vsel %vm562, %v559, %v561
      %569 = vst [vmem:[#allocation1] ss:$2 sm:$0xff] %v318
      %v570 = vld.sshfl [vmem:[#allocation1] sm:$0xff pattern:$0x75316420]
      %v571 = vld.sshfl [vmem:[#allocation1 + $0x8] sm:$0xff pattern:$0x75316420]
      %572 = vrot.lane.b32.xlu0 %v570, 102
      %v573 = vpop.permute.xlu0 %572
      %574 = vrot.lane.b32.xlu0 %v571, 102
      %v575 = vpop.permute.xlu0 %574
      %v576 = vsel %vm256, %v573, %v575
      %s582 = scalar_lea.vmem [#allocation1], 1
      %583 = vst [vmem:[%s582] ss:$2 sm:$0xff] %v331
      %s584 = scalar_lea.vmem [#allocation1], 17
      %585 = vst [vmem:[%s584] ss:$2 sm:$0xff] %v332
      %v586 = vld.sshfl [vmem:[#allocation1] sm:$0xff pattern:$0x75316420]
      %v587 = vld.sshfl [vmem:[#allocation1 + $0x8] sm:$0xff pattern:$0x75316420]
      %v588 = vld.sshfl [vmem:[#allocation1 + $0x10] sm:$0xff pattern:$0x75316420]
      %589 = vrot.lane.b32.xlu0 %v586, 51
      %v590 = vpop.permute.xlu0 %589
      %591 = vrot.lane.b32.xlu0 %v587, 51
      %v592 = vpop.permute.xlu0 %591
      %593 = vrot.lane.b32.xlu0 %v588, 51
      %v594 = vpop.permute.xlu0 %593
      %v595 = vsel %vm327, %v590, %v592
      %v596 = vsel %vm327, %v592, %v594
      %600 = vst [vmem:[#allocation1] ss:$2 sm:$0xff] %v246
      %s601 = scalar_lea.vmem [#allocation1], 16
      %602 = vst [vmem:[%s601] ss:$2 sm:$0xff] %v247
      %v603 = vld.sshfl [vmem:[#allocation1] sm:$0xff pattern:$0x75316420]
      %v604 = vld.sshfl [vmem:[#allocation1 + $0x8] sm:$0xff pattern:$0x75316420]
      %v605 = vld.sshfl [vmem:[#allocation1 + $0x10] sm:$0xff pattern:$0x75316420]
      %606 = vrot.lane.b32.xlu0 %v603, 45
      %v607 = vpop.permute.xlu0 %606
      %608 = vrot.lane.b32.xlu0 %v604, 45
      %v609 = vpop.permute.xlu0 %608
      %610 = vrot.lane.b32.xlu0 %v605, 45
      %v611 = vpop.permute.xlu0 %610
      %vm612 = vcmask 367616
      %v613 = vsel %vm612, %v607, %v609
      %v614 = vsel %vm612, %v609, %v611
      %s620 = scalar_lea.vmem [#allocation1], 1
      %621 = vst [vmem:[%s620] ss:$2 sm:$0xff] %v341
      %s622 = scalar_lea.vmem [#allocation1], 17
      %623 = vst [vmem:[%s622] ss:$2 sm:$0xff] %v342
      %v624 = vld.sshfl [vmem:[#allocation1] sm:$0xff pattern:$0x75316420]
      %v625 = vld.sshfl [vmem:[#allocation1 + $0x8] sm:$0xff pattern:$0x75316420]
      %v626 = vld.sshfl [vmem:[#allocation1 + $0x10] sm:$0xff pattern:$0x75316420]
      %627 = vrot.lane.b32.xlu0 %v624, 39
      %v628 = vpop.permute.xlu0 %627
      %629 = vrot.lane.b32.xlu0 %v625, 39
      %v630 = vpop.permute.xlu0 %629
      %631 = vrot.lane.b32.xlu0 %v626, 39
      %v632 = vpop.permute.xlu0 %631
      %vm633 = vcmask 318464
      %v634 = vsel %vm633, %v628, %v630
      %v635 = vsel %vm633, %v630, %v632
      %640 = vst [vmem:[#allocation1] ss:$2 sm:$0xff] %v353
      %v641 = vld.sshfl [vmem:[#allocation1] sm:$0xff pattern:$0x75316420]
      %v642 = vld.sshfl [vmem:[#allocation1 + $0x8] sm:$0xff pattern:$0x75316420]
      %643 = vrot.lane.b32.xlu0 %v641, 102
      %v644 = vpop.permute.xlu0 %643
      %645 = vrot.lane.b32.xlu0 %v642, 102
      %v646 = vpop.permute.xlu0 %645
      %v647 = vsel %vm256, %v644, %v646
      %s651 = scalar_lea.vmem [#allocation1], 1
      %652 = vst [vmem:[%s651] ss:$2 sm:$0xff] %v246
      %s653 = scalar_lea.vmem [#allocation1], 17
      %654 = vst [vmem:[%s653] ss:$2 sm:$0xff] %v247
      %v655 = vld.sshfl [vmem:[#allocation1 + $0x8] sm:$0xff pattern:$0x75316420]
      %v656 = vld.sshfl [vmem:[#allocation1 + $0x10] sm:$0xff pattern:$0x75316420]
      %v657 = vld.sshfl [vmem:[#allocation1 + $0x18] sm:$0xff pattern:$0x75316420]
      %658 = vrot.lane.b32.xlu0 %v655, 77
      %v659 = vpop.permute.xlu0 %658
      %660 = vrot.lane.b32.xlu0 %v656, 77
      %v661 = vpop.permute.xlu0 %660
      %662 = vrot.lane.b32.xlu0 %v657, 77
      %v663 = vpop.permute.xlu0 %662
      %v664 = vsel %vm518, %v659, %v661
      %v665 = vsel %vm518, %v661, %v663
      %670 = vst [vmem:[#allocation1] ss:$2 sm:$0xff] %v364
      %v671 = vld.sshfl [vmem:[#allocation1] sm:$0xff pattern:$0x75316420]
      %v672 = vld.sshfl [vmem:[#allocation1 + $0x8] sm:$0xff pattern:$0x75316420]
      %673 = vrot.lane.b32.xlu0 %v671, 102
      %v674 = vpop.permute.xlu0 %673
      %675 = vrot.lane.b32.xlu0 %v672, 102
      %v676 = vpop.permute.xlu0 %675
      %v677 = vsel %vm256, %v674, %v676
      %s682 = scalar_lea.vmem [#allocation1], 1
      %683 = vst [vmem:[%s682] ss:$2 sm:$0xff] %v375
      %v684 = vld.sshfl [vmem:[#allocation1] sm:$0xff pattern:$0x75316420]
      %v685 = vld.sshfl [vmem:[#allocation1 + $0x8] sm:$0xff pattern:$0x75316420]
      %686 = vrot.lane.b32.xlu0 %v684, 102
      %v687 = vpop.permute.xlu0 %686
      %688 = vrot.lane.b32.xlu0 %v685, 102
      %v689 = vpop.permute.xlu0 %688
      %v690 = vsel %vm256, %v687, %v689
      %v694 = vsel %vm280, %v448, %v468
      %v695 = vsel %vm280, %v449, %v469
      %v696 = vsel %vm280, %v450, %v466
      %v697 = vsel %vm280, %v488, %v499
      %v698 = vsel %vm280, %v489, %v502
      %v699 = vsel %vm280, %v486, %v501
      %v700 = vsel %vm280, %v513, %v530
      %v701 = vsel %vm280, %v519, %v533
      %v702 = vsel %vm280, %v520, %v532
      %v703 = vsel %vm280, %v542, %v557
      %v704 = vsel %vm280, %v545, %v563
      %v705 = vsel %vm280, %v544, %v564
      %v706 = vsel %vm280, %v573, %v590
      %v707 = vsel %vm280, %v576, %v595
      %v708 = vsel %vm280, %v575, %v596
      %v709 = vsel %vm280, %v607, %v628
      %v710 = vsel %vm280, %v613, %v634
      %v711 = vsel %vm280, %v614, %v635
      %v712 = vsel %vm280, %v644, %v659
      %v713 = vsel %vm280, %v647, %v664
      %v714 = vsel %vm280, %v646, %v665
      %v715 = vsel %vm280, %v674, %v687
      %v716 = vsel %vm280, %v677, %v690
      %v717 = vsel %vm280, %v676, %v689
      %718 = vst [vmem:[#allocation1] ss:$2 sm:$0xff] %v246
      %s719 = scalar_lea.vmem [#allocation1], 16
      %720 = vst [vmem:[%s719] ss:$2 sm:$0xff] %v247
      %v721 = vld.sshfl [vmem:[#allocation1 + $0x8] sm:$0xff pattern:$0x75316420]
      %v722 = vld.sshfl [vmem:[#allocation1 + $0x10] sm:$0xff pattern:$0x75316420]
      %v723 = vld.sshfl [vmem:[#allocation1 + $0x18] sm:$0xff pattern:$0x75316420]
      %724 = vrot.lane.b32.xlu0 %v721, 7
      %v725 = vpop.permute.xlu0 %724
      %726 = vrot.lane.b32.xlu0 %v722, 7
      %v727 = vpop.permute.xlu0 %726
      %728 = vrot.lane.b32.xlu0 %v723, 7
      %v729 = vpop.permute.xlu0 %728
      %vm730 = vcmask 56320
      %v731 = vsel %vm730, %v725, %v727
      %v732 = vsel %vm730, %v727, %v729
      %s736 = scalar_lea.vmem [#allocation1], 1
      %737 = vst [vmem:[%s736] ss:$2 sm:$0xff] %v386
      %v738 = vld.sshfl [vmem:[#allocation1] sm:$0xff pattern:$0x75316420]
      %v739 = vld.sshfl [vmem:[#allocation1 + $0x8] sm:$0xff pattern:$0x75316420]
      %743 = vst [vmem:[#allocation1] ss:$2 sm:$0xff] %v391
      %v744 = vld.sshfl [vmem:[#allocation1] sm:$0xff pattern:$0x75316420]
      %v745 = vld.sshfl [vmem:[#allocation1 + $0x8] sm:$0xff pattern:$0x75316420]
      %s748 = scalar_lea.vmem [#allocation1], 1
      %749 = vst [vmem:[%s748] ss:$2 sm:$0xff] %v246
      %s750 = scalar_lea.vmem [#allocation1], 17
      %751 = vst [vmem:[%s750] ss:$2 sm:$0xff] %v247
      %v752 = vld.sshfl [vmem:[#allocation1] sm:$0xff pattern:$0x75316420]
      %v753 = vld.sshfl [vmem:[#allocation1 + $0x8] sm:$0xff pattern:$0x75316420]
      %v754 = vld.sshfl [vmem:[#allocation1 + $0x10] sm:$0xff pattern:$0x75316420]
      %755 = vrot.lane.b32.xlu0 %v752, 119
      %v756 = vpop.permute.xlu0 %755
      %757 = vrot.lane.b32.xlu0 %v753, 119
      %v758 = vpop.permute.xlu0 %757
      %759 = vrot.lane.b32.xlu0 %v754, 119
      %v760 = vpop.permute.xlu0 %759
      %vm761 = vcmask 973824
      %v762 = vsel %vm761, %v756, %v758
      %v763 = vsel %vm761, %v758, %v760
      %768 = vst [vmem:[#allocation1] ss:$2 sm:$0xff] %v400
      %s769 = scalar_lea.vmem [#allocation1], 16
      %770 = vst [vmem:[%s769] ss:$2 sm:$0xff] %v401
      %v771 = vld.sshfl [vmem:[#allocation1] sm:$0xff pattern:$0x75316420]
      %v772 = vld.sshfl [vmem:[#allocation1 + $0x8] sm:$0xff pattern:$0x75316420]
      %v773 = vld.sshfl [vmem:[#allocation1 + $0x10] sm:$0xff pattern:$0x75316420]
      %774 = vrot.lane.b32.xlu0 %v771, 110
      %v775 = vpop.permute.xlu0 %774
      %776 = vrot.lane.b32.xlu0 %v772, 110
      %v777 = vpop.permute.xlu0 %776
      %778 = vrot.lane.b32.xlu0 %v773, 110
      %v779 = vpop.permute.xlu0 %778
      %vm780 = vcmask 900096
      %v781 = vsel %vm780, %v775, %v777
      %v782 = vsel %vm780, %v777, %v779
      %s786 = scalar_lea.vmem [#allocation1], 1
      %787 = vst [vmem:[%s786] ss:$2 sm:$0xff] %v412
      %v788 = vld.sshfl [vmem:[#allocation1] sm:$0xff pattern:$0x75316420]
      %v789 = vld.sshfl [vmem:[#allocation1 + $0x8] sm:$0xff pattern:$0x75316420]
      %792 = vst [vmem:[#allocation1] ss:$2 sm:$0xff] %v246
      %s793 = scalar_lea.vmem [#allocation1], 16
      %794 = vst [vmem:[%s793] ss:$2 sm:$0xff] %v247
      %v795 = vld.sshfl [vmem:[#allocation1 + $0x8] sm:$0xff pattern:$0x75316420]
      %v796 = vld.sshfl [vmem:[#allocation1 + $0x10] sm:$0xff pattern:$0x75316420]
      %v797 = vld.sshfl [vmem:[#allocation1 + $0x18] sm:$0xff pattern:$0x75316420]
      %798 = vrot.lane.b32.xlu0 %v795, 103
      %v799 = vpop.permute.xlu0 %798
      %800 = vrot.lane.b32.xlu0 %v796, 103
      %v801 = vpop.permute.xlu0 %800
      %802 = vrot.lane.b32.xlu0 %v797, 103
      %v803 = vpop.permute.xlu0 %802
      %vm804 = vcmask 842752
      %v805 = vsel %vm804, %v799, %v801
      %v806 = vsel %vm804, %v801, %v803
      %s810 = scalar_lea.vmem [#allocation1], 1
      %811 = vst [vmem:[%s810] ss:$2 sm:$0xff] %v423
      %v812 = vld.sshfl [vmem:[#allocation1] sm:$0xff pattern:$0x75316420]
      %v813 = vld.sshfl [vmem:[#allocation1 + $0x8] sm:$0xff pattern:$0x75316420]
      %818 = vst [vmem:[#allocation1] ss:$2 sm:$0xff] %v432
      %s819 = scalar_lea.vmem [#allocation1], 16
      %820 = vst [vmem:[%s819] ss:$2 sm:$0xff] %v433
      %v821 = vld.sshfl [vmem:[#allocation1] sm:$0xff pattern:$0x75316420]
      %v822 = vld.sshfl [vmem:[#allocation1 + $0x8] sm:$0xff pattern:$0x75316420]
      %v823 = vld.sshfl [vmem:[#allocation1 + $0x10] sm:$0xff pattern:$0x75316420]
      %824 = vrot.lane.b32.xlu0 %v821, 96
      %v825 = vpop.permute.xlu0 %824
      %826 = vrot.lane.b32.xlu0 %v822, 96
      %v827 = vpop.permute.xlu0 %826
      %828 = vrot.lane.b32.xlu0 %v823, 96
      %v829 = vpop.permute.xlu0 %828
      %vm830 = vcmask 785408
      %v831 = vsel %vm830, %v825, %v827
      %v832 = vsel %vm830, %v827, %v829
      %s836 = scalar_lea.vmem [#allocation1], 1
      %837 = vst [vmem:[%s836] ss:$2 sm:$0xff] %v247
      %s838 = scalar_lea.vmem [#allocation1], 17
      %839 = vst [vmem:[%s838] ss:$2 sm:$0xff] %v248
      %v840 = vld.sshfl [vmem:[#allocation1] sm:$0xff pattern:$0x75316420]
      %v841 = vld.sshfl [vmem:[#allocation1 + $0x8] sm:$0xff pattern:$0x75316420]
      %v842 = vld.sshfl [vmem:[#allocation1 + $0x10] sm:$0xff pattern:$0x75316420]
      %843 = vrot.lane.b32.xlu0 %v840, 87
      %v844 = vpop.permute.xlu0 %843
      %845 = vrot.lane.b32.xlu0 %v841, 87
      %v846 = vpop.permute.xlu0 %845
      %847 = vrot.lane.b32.xlu0 %v842, 87
      %v848 = vpop.permute.xlu0 %847
      %vm849 = vcmask 711680
      %v850 = vsel %vm849, %v844, %v846
      %v851 = vsel %vm849, %v846, %v848
      %856 = vst [vmem:[#allocation1] ss:$2 sm:$0xff] %v441
      %s857 = scalar_lea.vmem [#allocation1], 16
      %858 = vst [vmem:[%s857] ss:$2 sm:$0xff] %v442
      %v859 = vld.sshfl [vmem:[#allocation1] sm:$0xff pattern:$0x75316420]
      %v860 = vld.sshfl [vmem:[#allocation1 + $0x8] sm:$0xff pattern:$0x75316420]
      %v861 = vld.sshfl [vmem:[#allocation1 + $0x10] sm:$0xff pattern:$0x75316420]
      %862 = vrot.lane.b32.xlu0 %v859, 78
      %v863 = vpop.permute.xlu0 %862
      %864 = vrot.lane.b32.xlu0 %v860, 78
      %v865 = vpop.permute.xlu0 %864
      %866 = vrot.lane.b32.xlu0 %v861, 78
      %v867 = vpop.permute.xlu0 %866
      %vm868 = vcmask 637952
      %v869 = vsel %vm868, %v863, %v865
      %v870 = vsel %vm868, %v865, %v867
      %v871 = vsel %vm280, %v731, %v738
      %v872 = vsel %vm280, %v732, %v739
      %v873 = vsel %vm280, %v744, %v762
      %v874 = vsel %vm280, %v745, %v763
      %v875 = vsel %vm280, %v781, %v788
      %v876 = vsel %vm280, %v782, %v789
      %v877 = vsel %vm280, %v805, %v812
      %v878 = vsel %vm280, %v806, %v813
      %v879 = vsel %vm280, %v831, %v850
      %v880 = vsel %vm280, %v832, %v851
      %891 = vrot.lane.b32.xlu0 %v871, 102
      %v892 = vpop.permute.xlu0 %891
      %893 = vrot.lane.b32.xlu0 %v872, 102
      %v894 = vpop.permute.xlu0 %893
      %895 = vrot.lane.b32.xlu0 %v873, 102
      %v896 = vpop.permute.xlu0 %895
      %897 = vrot.lane.b32.xlu0 %v874, 102
      %v898 = vpop.permute.xlu0 %897
      %899 = vrot.lane.b32.xlu0 %v875, 102
      %v900 = vpop.permute.xlu0 %899
      %901 = vrot.lane.b32.xlu0 %v876, 102
      %v902 = vpop.permute.xlu0 %901
      %903 = vrot.lane.b32.xlu0 %v877, 102
      %v904 = vpop.permute.xlu0 %903
      %905 = vrot.lane.b32.xlu0 %v878, 102
      %v906 = vpop.permute.xlu0 %905
      %907 = vrot.lane.b32.xlu0 %v879, 102
      %v908 = vpop.permute.xlu0 %907
      %909 = vrot.lane.b32.xlu0 %v880, 102
      %v910 = vpop.permute.xlu0 %909
      %911 = vrot.lane.b32.xlu0 %v869, 102
      %v912 = vpop.permute.xlu0 %911
      %913 = vrot.lane.b32.xlu0 %v870, 102
      %v914 = vpop.permute.xlu0 %913
      %v915 = vsel %vm256, %v892, %v894
      %v916 = vsel %vm256, %v896, %v898
      %v917 = vsel %vm256, %v900, %v902
      %v918 = vsel %vm256, %v904, %v906
      %v919 = vsel %vm256, %v908, %v910
      %v920 = vsel %vm256, %v912, %v914
      %922 = vset.pattern.permute.xlu0 0
      %923 = vperm.xlu0 %922, %v244
      %v924 = vpop.permute.xlu0 %923
      %927 = vset.pattern.permute.xlu0 0
      %928 = vperm.xlu0 %927, %v245
      %v929 = vpop.permute.xlu0 %928
      %955 = vrot.lane.b32.xlu0 %v694, 26
      %v956 = vpop.permute.xlu0 %955
      %957 = vrot.lane.b32.xlu0 %v695, 26
      %v958 = vpop.permute.xlu0 %957
      %959 = vrot.lane.b32.xlu0 %v696, 26
      %v960 = vpop.permute.xlu0 %959
      %961 = vrot.lane.b32.xlu0 %v697, 26
      %v962 = vpop.permute.xlu0 %961
      %963 = vrot.lane.b32.xlu0 %v698, 26
      %v964 = vpop.permute.xlu0 %963
      %965 = vrot.lane.b32.xlu0 %v699, 26
      %v966 = vpop.permute.xlu0 %965
      %967 = vrot.lane.b32.xlu0 %v700, 26
      %v968 = vpop.permute.xlu0 %967
      %969 = vrot.lane.b32.xlu0 %v701, 26
      %v970 = vpop.permute.xlu0 %969
      %971 = vrot.lane.b32.xlu0 %v702, 26
      %v972 = vpop.permute.xlu0 %971
      %973 = vrot.lane.b32.xlu0 %v703, 26
      %v974 = vpop.permute.xlu0 %973
      %975 = vrot.lane.b32.xlu0 %v704, 26
      %v976 = vpop.permute.xlu0 %975
      %977 = vrot.lane.b32.xlu0 %v705, 26
      %v978 = vpop.permute.xlu0 %977
      %979 = vrot.lane.b32.xlu0 %v706, 26
      %v980 = vpop.permute.xlu0 %979
      %981 = vrot.lane.b32.xlu0 %v707, 26
      %v982 = vpop.permute.xlu0 %981
      %983 = vrot.lane.b32.xlu0 %v708, 26
      %v984 = vpop.permute.xlu0 %983
      %985 = vrot.lane.b32.xlu0 %v709, 26
      %v986 = vpop.permute.xlu0 %985
      %987 = vrot.lane.b32.xlu0 %v710, 26
      %v988 = vpop.permute.xlu0 %987
      %989 = vrot.lane.b32.xlu0 %v711, 26
      %v990 = vpop.permute.xlu0 %989
      %991 = vrot.lane.b32.xlu0 %v712, 26
      %v992 = vpop.permute.xlu0 %991
      %993 = vrot.lane.b32.xlu0 %v713, 26
      %v994 = vpop.permute.xlu0 %993
      %995 = vrot.lane.b32.xlu0 %v714, 26
      %v996 = vpop.permute.xlu0 %995
      %997 = vrot.lane.b32.xlu0 %v715, 26
      %v998 = vpop.permute.xlu0 %997
      %999 = vrot.lane.b32.xlu0 %v716, 26
      %v1000 = vpop.permute.xlu0 %999
      %1001 = vrot.lane.b32.xlu0 %v717, 26
      %v1002 = vpop.permute.xlu0 %1001
      %1003 = vrot.lane.b32.xlu0 %v892, 26
      %v1004 = vpop.permute.xlu0 %1003
      %1005 = vrot.lane.b32.xlu0 %v915, 26
      %v1006 = vpop.permute.xlu0 %1005
      %1007 = vrot.lane.b32.xlu0 %v894, 26
      %v1008 = vpop.permute.xlu0 %1007
      %1009 = vrot.lane.b32.xlu0 %v896, 26
      %v1010 = vpop.permute.xlu0 %1009
      %1011 = vrot.lane.b32.xlu0 %v916, 26
      %v1012 = vpop.permute.xlu0 %1011
      %1013 = vrot.lane.b32.xlu0 %v898, 26
      %v1014 = vpop.permute.xlu0 %1013
      %1015 = vrot.lane.b32.xlu0 %v900, 26
      %v1016 = vpop.permute.xlu0 %1015
      %1017 = vrot.lane.b32.xlu0 %v917, 26
      %v1018 = vpop.permute.xlu0 %1017
      %1019 = vrot.lane.b32.xlu0 %v902, 26
      %v1020 = vpop.permute.xlu0 %1019
      %1021 = vrot.lane.b32.xlu0 %v904, 26
      %v1022 = vpop.permute.xlu0 %1021
      %1023 = vrot.lane.b32.xlu0 %v918, 26
      %v1024 = vpop.permute.xlu0 %1023
      %1025 = vrot.lane.b32.xlu0 %v906, 26
      %v1026 = vpop.permute.xlu0 %1025
      %1027 = vrot.lane.b32.xlu0 %v908, 26
      %v1028 = vpop.permute.xlu0 %1027
      %1029 = vrot.lane.b32.xlu0 %v919, 26
      %v1030 = vpop.permute.xlu0 %1029
      %1031 = vrot.lane.b32.xlu0 %v910, 26
      %v1032 = vpop.permute.xlu0 %1031
      %1033 = vrot.lane.b32.xlu0 %v912, 26
      %v1034 = vpop.permute.xlu0 %1033
      %1035 = vrot.lane.b32.xlu0 %v920, 26
      %v1036 = vpop.permute.xlu0 %1035
      %1037 = vrot.lane.b32.xlu0 %v914, 26
      %v1038 = vpop.permute.xlu0 %1037
      %vm1039 = vcmask 211968
      %v1040 = vsel %vm1039, %v956, %v958
      %v1041 = vsel %vm1039, %v958, %v960
      %v1042 = vsel %vm1039, %v962, %v964
      %v1043 = vsel %vm1039, %v964, %v966
      %v1044 = vsel %vm1039, %v968, %v970
      %v1045 = vsel %vm1039, %v970, %v972
      %v1046 = vsel %vm1039, %v974, %v976
      %v1047 = vsel %vm1039, %v976, %v978
      %v1048 = vsel %vm1039, %v980, %v982
      %v1049 = vsel %vm1039, %v982, %v984
      %v1050 = vsel %vm1039, %v986, %v988
      %v1051 = vsel %vm1039, %v988, %v990
      %v1052 = vsel %vm1039, %v992, %v994
      %v1053 = vsel %vm1039, %v994, %v996
      %v1054 = vsel %vm1039, %v998, %v1000
      %v1055 = vsel %vm1039, %v1000, %v1002
      %v1056 = vsel %vm1039, %v1004, %v1006
      %v1057 = vsel %vm1039, %v1006, %v1008
      %v1058 = vsel %vm1039, %v1010, %v1012
      %v1059 = vsel %vm1039, %v1012, %v1014
      %v1060 = vsel %vm1039, %v1016, %v1018
      %v1061 = vsel %vm1039, %v1018, %v1020
      %v1062 = vsel %vm1039, %v1022, %v1024
      %v1063 = vsel %vm1039, %v1024, %v1026
      %v1064 = vsel %vm1039, %v1028, %v1030
      %v1065 = vsel %vm1039, %v1030, %v1032
      %v1066 = vsel %vm1039, %v1034, %v1036
      %v1067 = vsel %vm1039, %v1036, %v1038
      %v1095 = vsel %vm266, %v242, 0
      %v1098 = vsel %vm266, %v243, 0
      %v1100 = vsel %vm280, %v1066, 0
      %v1102 = vsel %vm280, %v1067, 0
      %1104 = vmatpush.msra.mxu0 0.0
      %1105 = vmatpush.msra.mxu0 0.0
      %1106 = vmatpush.msra.mxu0 %v1100
      %1107 = vmatpush.msra.mxu0 %v1064
      %1108 = vmatpush.msra.mxu0 %v1062
      %1109 = vmatpush.msra.mxu0 %v1060
      %1110 = vmatpush.msra.mxu0 %v1058
      %1111 = vmatpush.msra.mxu0 %v1056
      %1112 = vmatpush.msra.mxu0 %v1054
      %1113 = vmatpush.msra.mxu0 %v1052
      %1114 = vmatpush.msra.mxu0 %v1050
      %1115 = vmatpush.msra.mxu0 %v1048
      %1116 = vmatpush.msra.mxu0 %v1046
      %1117 = vmatpush.msra.mxu0 %v1044
      %1118 = vmatpush.msra.mxu0 %v1042
      %1119 = vmatpush.msra.mxu0 %v1040
      %1120 = vmatmul.f32.gmra.mxu0 %v1095
      %v1121 = vpop.f32.mrf.mxu0
      %v1122 = vadd.f32 %v924, %v1121
      %1123 = vmatmul.f32.gmra.mxu0 %v1098
      %v1124 = vpop.f32.mrf.mxu0
      %v1125 = vadd.f32 %v929, %v1124
      %1126 = vdwg.mxu0
      %1127 = vmatpush.msra.mxu0 0.0
      %1128 = vmatpush.msra.mxu0 0.0
      %1129 = vmatpush.msra.mxu0 %v1102
      %1130 = vmatpush.msra.mxu0 %v1065
      %1131 = vmatpush.msra.mxu0 %v1063
      %1132 = vmatpush.msra.mxu0 %v1061
      %1133 = vmatpush.msra.mxu0 %v1059
      %1134 = vmatpush.msra.mxu0 %v1057
      %1135 = vmatpush.msra.mxu0 %v1055
      %1136 = vmatpush.msra.mxu0 %v1053
      %1137 = vmatpush.msra.mxu0 %v1051
      %1138 = vmatpush.msra.mxu0 %v1049
      %1139 = vmatpush.msra.mxu0 %v1047
      %1140 = vmatpush.msra.mxu0 %v1045
      %1141 = vmatpush.msra.mxu0 %v1043
      %1142 = vmatpush.msra.mxu0 %v1041
      %1143 = vmatmul.f32.gmra.mxu0 %v1095
      %v1144 = vpop.f32.mrf.mxu0
      %v1145 = vadd.f32 %v924, %v1144
      %1146 = vmatmul.f32.gmra.mxu0 %v1098
      %v1147 = vpop.f32.mrf.mxu0
      %v1148 = vadd.f32 %v929, %v1147
      %1149 = vdwg.mxu0
      %v1150 = vld [vmem:[%s236] sm:$0xf]
      %1152 = vset.pattern.permute.xlu0 0
      %1153 = vperm.xlu0 %1152, %v1150
      %v1154 = vpop.permute.xlu0 %1153
      %v1155 = vrot.slane %v1154, 4
      %v1157 = vsel %vm280, %v1125, %v1155
      %v1158 = vsel %vm280, %v1148, %v1155
      %1159 = vst [vmem:[%s241] sm:$0xff] %v1122
      %1160 = vst [vmem:[%s241 + $0x8] sm:$0xff] %v1145
      %1161 = vst [vmem:[%s241 + $0x10] sm:$0xff] %v1157
      %1162 = vst [vmem:[%s241 + $0x18] sm:$0xff] %v1158
      %p1163 = scmp.lt.s32.totalorder %s16, 1
      %s1164 = scalar_select %p1163, %s16, 1
      %s1165 = smul.addr %s1164, 4
      %s1166 = smul.addr %s1165, 8
      %s1167 = scalar_lea.vmem %s5, %s1166
      // Predicated region
      $region41: #{multi_atrous_forward.1} parent=39 // pred_check
        %p1168 = pneg %p149
      $region42: #{multi_atrous_forward.1} parent=39 // pred_check_branch
        %1170 = sbr.rel (%p1168) target = $region44
      $region43: #{multi_atrous_forward.1} parent=39 // pred_region
        _
      $region44: #{multi_atrous_forward.1} parent=39 // pred_fallthru
        _
    $region40: #{multi_atrous_forward.1} parent=5 // pred_fallthru
      _
    %p1171 = scmp.le.s32.totalorder 2, %s11
    // Predicated region
    $region45: #{multi_atrous_forward.1} parent=5 // pred_check
      %p1172 = pneg %p1171
    $region46: #{multi_atrous_forward.1} parent=5 // pred_check_branch
      %1174 = sbr.rel (%p1172) target = $region48
    $region47: #{multi_atrous_forward.1} parent=5 // pred_region
      %s1175 = ssub.s32 %s11, 2
      // Predicated region
      $region49: #{multi_atrous_forward.1} parent=47 // pred_check
        %p1176 = pneg %p155
      $region50: #{multi_atrous_forward.1} parent=47 // pred_check_branch
        %1178 = sbr.rel (%p1176) target = $region52
      $region51: #{multi_atrous_forward.1} parent=47 // pred_region
        %p1179 = scmp.lt.s32.totalorder %s17, 1
        %s1180 = scalar_select %p1179, %s17, 1
        %s1181 = smul.addr %s1180, 4
        %s1182 = smul.addr %s1181, 8
        %s1183 = scalar_lea.vmem %s5, %s1182
      $region52: #{multi_atrous_forward.1} parent=47 // pred_fallthru
        _
    $region48: #{multi_atrous_forward.1} parent=5 // pred_fallthru
      _
  $region6: #{multi_atrous_forward.1} parent=0 // loop_footer
    %s15 = sadd.s32 1, %s11
  $region7: #{multi_atrous_forward.1} parent=0 // loop_footer_branch
    %10 = sbr.rel target = $region3
  $region8: #{multi_atrous_forward.1} parent=0 // loop_exit
    _

</llo_original>
